<compile_context>
chip_gen: v6e
topology: v6e:2x2x1
jax: 0.10.0
libtpu: 0.0.40
codegen_flags: <defaults>
</compile_context>

<pallas_src>
import jax
import jax.numpy as jnp
from jax.experimental import pallas as pl
from jax.experimental.pallas import tpu as pltpu

LANE = 128


def _squared_relu_kernel(x_ref, o_ref):
    x = x_ref[...]
    r = jnp.maximum(x, jnp.zeros((), dtype=x.dtype))
    o_ref[...] = r * r


def _chip_tiling_params():
    """Returns (target block bytes, vmem_limit_bytes or None, multi_tensorcore)."""
    try:
        kind = jax.devices()[0].device_kind.lower()
    except Exception:
        kind = ""
    if "v7" in kind or "7x" in kind:
        # v7x: 64 MiB VMEM / 32 MiB default scoped, ~3.2 TB/s HBM, 2 TCs.
        return 6 * 1024 * 1024, 48 << 20, True
    if "v6" in kind:
        # v6e: 4 x 4 MiB double-buffered blocks fit the 32 MiB default scoped VMEM.
        return 4 * 1024 * 1024, None, False
    # v5e (16 MiB default scoped VMEM) and anything unrecognized: conservative.
    return 2 * 1024 * 1024, None, False


def squared_relu(x: jax.Array) -> jax.Array:
    orig_shape = x.shape
    dtype = x.dtype
    n = x.size
    if n == 0:
        return x

    itemsize = jnp.dtype(dtype).itemsize
    flat = x.reshape(-1)

    # Tiny inputs (< one 128-lane row): one full-extent block, no grid.
    if n < LANE:
        out = pl.pallas_call(
            _squared_relu_kernel,
            out_shape=jax.ShapeDtypeStruct((1, n), dtype),
            cost_estimate=pl.CostEstimate(
                flops=2 * n, transcendentals=0, bytes_accessed=2 * n * itemsize),
        )(flat.reshape(1, n))
        return out.reshape(orig_shape)

    # 128-aligned prefix goes through the tiled kernel; the <128-element tail
    # (if any) is computed with plain jnp and concatenated back.
    aligned_n = (n // LANE) * LANE
    prefix = flat if aligned_n == n else flat[:aligned_n]

    # Lane-dense slab: widest multiple of 128 that divides the prefix length.
    for lanes in (2048, 1024, 512, 256, 128):
        if aligned_n % lanes == 0:
            break
    rows = aligned_n // lanes

    target_bytes, vmem_limit, multi_core = _chip_tiling_params()

    # Row tile: ~target_bytes per block buffer, multiple of 32 rows
    # (sublane-packing safe for f32 / bf16 / int8), floor 32.
    tr = max(32, (target_bytes // (lanes * itemsize)) // 32 * 32)

    # v7x: the single "parallel" grid axis is what shards across the two
    # TensorCores -- make sure slabs worth splitting get >= 2 grid steps
    # instead of collapsing into one full-extent block.
    slab_bytes = rows * lanes * itemsize
    if multi_core and slab_bytes > (1 << 20) and rows >= 64:
        half = ((pl.cdiv(rows, 2) + 31) // 32) * 32
        tr = min(tr, half)

    if rows <= tr:
        tr = rows  # single full-extent block (always a legal block dim)
    grid = (pl.cdiv(rows, tr),)

    x2d = prefix.reshape(rows, lanes)

    out2d = pl.pallas_call(
        _squared_relu_kernel,
        out_shape=jax.ShapeDtypeStruct((rows, lanes), dtype),
        grid_spec=pltpu.PrefetchScalarGridSpec(
            num_scalar_prefetch=0,
            grid=grid,
            in_specs=[pl.BlockSpec((tr, lanes), lambda i: (i, 0))],
            out_specs=pl.BlockSpec((tr, lanes), lambda i: (i, 0)),
        ),
        compiler_params=pltpu.CompilerParams(
            dimension_semantics=("parallel",),
            vmem_limit_bytes=vmem_limit),
        cost_estimate=pl.CostEstimate(
            flops=2 * aligned_n,
            transcendentals=0,
            bytes_accessed=2 * aligned_n * itemsize),
    )(x2d)

    out_flat = out2d.reshape(-1)
    if aligned_n != n:
        tail = flat[aligned_n:]
        tail_out = jnp.square(jnp.maximum(tail, 0.0)).astype(dtype)
        out_flat = jnp.concatenate([out_flat, tail_out])
    return out_flat.reshape(orig_shape)


if __name__ == "__main__":
    key = jax.random.PRNGKey(0)
    k1, k2, k3 = jax.random.split(key, 3)

    # 128-aligned float32 case (typical (B, C, H, W) activation).
    x = jax.random.normal(k1, (2, 4, 16, 16), dtype=jnp.float32) * 2.0
    out = jax.block_until_ready(squared_relu(x))
    ref = jnp.square(jnp.maximum(x, 0.0))
    assert out.shape == x.shape and out.dtype == x.dtype
    assert jnp.allclose(out, ref, atol=1e-6), "f32 aligned mismatch"

    # Misaligned element count (exercises the prefix + tail stitch path).
    y = jax.random.normal(k2, (3, 127), dtype=jnp.float32)
    out_y = jax.block_until_ready(squared_relu(y))
    ref_y = jnp.square(jnp.maximum(y, 0.0))
    assert out_y.shape == y.shape and out_y.dtype == y.dtype
    assert jnp.allclose(out_y, ref_y, atol=1e-6), "f32 misaligned mismatch"

    # Tiny (<128 elements) bfloat16 case (exercises the full-extent path).
    z = jax.random.normal(k3, (2, 8), dtype=jnp.float32).astype(jnp.bfloat16)
    out_z = jax.block_until_ready(squared_relu(z))
    ref_z = jnp.square(jnp.maximum(z, 0.0))
    assert out_z.shape == z.shape and out_z.dtype == jnp.bfloat16
    assert jnp.allclose(out_z.astype(jnp.float32), ref_z.astype(jnp.float32),
                        rtol=2e-2, atol=1e-2), "bf16 tiny mismatch"

    print("KERNEL_OK")
</pallas_src>

<mosaic_0001>
module attributes {stable_mosaic.version = 11 : i64} {
  func.func @_squared_relu_kernel(%arg0: i32, %arg1: memref<1x2048xf32, #tpu.memory_space<vmem>>, %arg2: memref<1x2048xf32, #tpu.memory_space<vmem>>) attributes {dimension_semantics = [#tpu.dimension_semantics<parallel>], iteration_bounds = array<i64: 1>, scalar_prefetch = 0 : i64, scratch_operands = 0 : i64, tpu.core_type = #tpu.core_type<tc>, window_params = [{transform_indices = @transform_0, window_bounds = array<i64: 1, 2048>}, {transform_indices = @transform_1, window_bounds = array<i64: 1, 2048>}]} {
    %c0 = arith.constant 0 : index
    %c0_0 = arith.constant 0 : index
    %0 = vector.load %arg1[%c0, %c0_0] : memref<1x2048xf32, #tpu.memory_space<vmem>>, vector<1x2048xf32>
    %cst = arith.constant 0.000000e+00 : f32
    %1 = vector.broadcast %cst : f32 to vector<1x2048xf32>
    %2 = arith.maximumf %0, %1 : vector<1x2048xf32>
    %3 = arith.mulf %2, %2 : vector<1x2048xf32>
    %c0_1 = arith.constant 0 : index
    %c0_2 = arith.constant 0 : index
    %4 = vector.load %arg2[%c0_1, %c0_2] : memref<1x2048xf32, #tpu.memory_space<vmem>>, vector<1x2048xf32>
    tpu.vector_store %arg2[%c0_1, %c0_2], %3 {strides = array<i32>} : memref<1x2048xf32, #tpu.memory_space<vmem>>, vector<1x2048xf32>,
    return
  }
  func.func @transform_0(%arg0: i32) -> (i32, i32) {
    %c0_i32 = arith.constant 0 : i32
    %c0_i32_0 = arith.constant 0 : i32
    return %arg0, %c0_i32 : i32, i32
  }
  func.func @transform_1(%arg0: i32) -> (i32, i32) {
    %c0_i32 = arith.constant 0 : i32
    %c0_i32_0 = arith.constant 0 : i32
    return %arg0, %c0_i32 : i32, i32
  }
}

</mosaic_0001>

<llo_original>
// kernel: tpu_custom_call.1
$region0: #{tpu_custom_call.1}
  #allocation0 [shape = 'u32[]', space=smem, size = 0x4, offset = 0x4, fixed_abs, tag = 'smem constant byte address 0x4 - core index']
  #allocation1 [shape = 'u32[144,128]{1,0:T(1,128)}', space=vmem, size = 0x12000, scoped, tag = 'internal scratch']
  %s0 = inlined_call_operand.hbm [shape: f32[1,2048], index: 0, kind: input, shape index: {}]
  %s1 = inlined_call_operand.hbm [shape: f32[1,2048], index: 1, kind: output, shape index: {}]
  %s2 = sld [smem:[#allocation0]]
  $region18: #{tpu_custom_call.1} parent=0
    _
  %s4 = ssub.s32 1, %s2
  %s5 = scalar_select 0, %s4, %s2
  $region1: #{tpu_custom_call.1} parent=0
    #allocation2 [shape = 'u8[8192]{0}', space=vmem, size = 0x2000, scoped, tag = 'input window, operand 0, single buffered']
    #allocation3 [shape = 's32[1]{0}', space=sflag, size = 0x4, scoped, tag = 'scoped memory for tpu_custom_call.1']
    #allocation4 [shape = 's32[1]{0}', space=sflag, size = 0x4, scoped, tag = 'scoped memory for tpu_custom_call.1']
    #allocation5 [shape = 'u8[8192]{0}', space=vmem, size = 0x2000, scoped, tag = 'output window, operand 0, single buffered']
    %6 = vsyncpa [#allocation3], 0
    %7 = vsyncpa [#allocation4], 0
    // Predicated region
    $region2: #{tpu_custom_call.1} parent=1 // pred_check
      _
    $region3: #{tpu_custom_call.1} parent=1 // pred_check_branch
      %9 = sbr.rel (0) target = $region5
    $region4: #{tpu_custom_call.1} parent=1 // pred_region
      %s11 = ssub.s32 256, 256
      %12 = vsyncadd [#allocation3], %s11
      %s14 = sshll.u32 [#allocation2], 4
      %s15 = int_to_ptr.vmem [resolvable:$true] %s14
      %17 = dma.hbm_to_vmem [thread:$0]  %s0, 256, %s15, [#allocation3]
    $region5: #{tpu_custom_call.1} parent=1 // pred_fallthru
      _
    // Predicated region
    $region6: #{tpu_custom_call.1} parent=1 // pred_check
      _
    $region7: #{tpu_custom_call.1} parent=1 // pred_check_branch
      %19 = sbr.rel (0) target = $region9
    $region8: #{tpu_custom_call.1} parent=1 // pred_region
      %20 = dma.done [#allocation3], 256
    $region9: #{tpu_custom_call.1} parent=1 // pred_fallthru
      _
    %v21 = vld [vmem:[#allocation2] sm:$0xff]
    %v22 = vld [vmem:[#allocation2 + $0x8] sm:$0xff]
    %v23 = vmax.f32 %v21, 0.0
    %v24 = vmax.f32 %v22, 0.0
    %v25 = vmul.f32 %v23, %v23
    %v26 = vmul.f32 %v24, %v24
    %27 = vst [vmem:[#allocation5] sm:$0xff] %v25
    %28 = vst [vmem:[#allocation5 + $0x8] sm:$0xff] %v26
    // Predicated region
    $region10: #{tpu_custom_call.1} parent=1 // pred_check
      _
    $region11: #{tpu_custom_call.1} parent=1 // pred_check_branch
      %30 = sbr.rel (0) target = $region13
    $region12: #{tpu_custom_call.1} parent=1 // pred_region
      %s32 = ssub.s32 256, 256
      %33 = vsyncadd [#allocation4], %s32
      %s35 = sshll.u32 [#allocation5], 4
      %s36 = int_to_ptr.vmem [resolvable:$true] %s35
      %38 = dma.vmem_to_hbm [thread:$0]  %s36, 256, %s1, [#allocation4]
    $region13: #{tpu_custom_call.1} parent=1 // pred_fallthru
      _
    // Predicated region
    $region14: #{tpu_custom_call.1} parent=1 // pred_check
      _
    $region15: #{tpu_custom_call.1} parent=1 // pred_check_branch
      %40 = sbr.rel (0) target = $region17
    $region16: #{tpu_custom_call.1} parent=1 // pred_region
      %41 = dma.done [#allocation4], 256
    $region17: #{tpu_custom_call.1} parent=1 // pred_fallthru
      _
    %42 = vsyncpa [#allocation3], 1
    %43 = vsyncpa [#allocation4], 1

</llo_original>
